<compile_context>
chip_gen: v7x
topology: tpu7x:2x2x1
jax: 0.10.0
libtpu: 0.0.40
codegen_flags: <defaults>
</compile_context>

<pallas_src>
import math
import functools

import jax
import jax.numpy as jnp
from jax import lax
from jax.experimental import pallas as pl
from jax.experimental.pallas import tpu as pltpu


# ---------------------------------------------------------------------------
# Positional-encoding table (identical to the PyTorch __init__ construction).
# ---------------------------------------------------------------------------
def make_pe_table(max_len: int, d_model: int) -> jnp.ndarray:
    position = jnp.arange(0, max_len, dtype=jnp.float32)[:, None]          # (L, 1)
    div_term = jnp.exp(
        jnp.arange(0, d_model, 2, dtype=jnp.float32)
        * -(math.log(10000.0) / d_model)
    )                                                                       # (D/2,)
    pe = jnp.zeros((max_len, d_model), dtype=jnp.float32)
    pe = pe.at[:, 0::2].set(jnp.sin(position * div_term))
    pe = pe.at[:, 1::2].set(jnp.cos(position * div_term))
    return pe                                                               # (L, D)


# ---------------------------------------------------------------------------
# Pallas kernels (operate on lane-dense 2-D blocks: x (tb, tc), pe (1, tc)).
# ---------------------------------------------------------------------------
def pe_add_kernel(x_ref, pe_ref, o_ref):
    # (tb, tc) + (1, tc): pe broadcasts over rows; straight VPU add.
    o_ref[...] = (x_ref[...] + pe_ref[...]).astype(o_ref.dtype)


def pe_add_dropout_kernel(seed_ref, x_ref, pe_ref, o_ref, *, thr, scale, n_cols):
    # Training path: (x + pe) with inverted dropout.
    # Mask = hash(global flat element index, seed) compared as raw uint32 against
    # thr = round(p * 2^32).  Grid/tiling invariant, branch-free, no HBM mask pass.
    y = x_ref[...].astype(jnp.float32) + pe_ref[...].astype(jnp.float32)
    tb, tc = y.shape  # static block shape

    # Global (row, col) of each element, computed in uint32 from the start so the
    # hash input is well-defined for arbitrarily large B*S*D.
    rows = (lax.broadcasted_iota(jnp.int32, (tb, tc), 0).astype(jnp.uint32)
            + (pl.program_id(0) * tb).astype(jnp.uint32))
    cols = (lax.broadcasted_iota(jnp.int32, (tb, tc), 1).astype(jnp.uint32)
            + (pl.program_id(1) * tc).astype(jnp.uint32))
    idx = rows * jnp.uint32(n_cols) + cols

    # Single-round integer hash (VPU-only: xor / shift / one 32-bit mul).
    seed = seed_ref[0].astype(jnp.uint32)
    h = idx ^ seed
    h = (h ^ (h >> 16)) * jnp.uint32(0x7FEB352D)
    h = h ^ (h >> 15)

    # keep with probability (1 - p): raw uint32 compare against round(p * 2^32).
    keep = h >= jnp.uint32(thr)

    o_ref[...] = jnp.where(keep, y * jnp.float32(scale), jnp.float32(0.0)).astype(o_ref.dtype)


# ---------------------------------------------------------------------------
# Block-size selection: ~4 MiB blocks, (8,128)-legal, dtype-aware sublane rounding.
# ---------------------------------------------------------------------------
_TARGET_BLOCK_BYTES = 4 * 1024 * 1024


def _round_rows(tb, B, sublane):
    if tb >= B:
        return B
    tb = (tb // sublane) * sublane
    if tb == 0:
        tb = min(sublane, B)
    return tb


def _choose_block(B, C, itemsize):
    sublane = {4: 8, 2: 16, 1: 32}.get(itemsize, 8)
    if C % 128 != 0:
        # Last block dim must span the full array when it is not 128-aligned.
        tc = C
        tb = _round_rows(min(B, max(1, _TARGET_BLOCK_BYTES // (tc * itemsize))), B, sublane)
        return tb, tc
    row_bytes = C * itemsize
    rows_budget = max(1, _TARGET_BLOCK_BYTES // row_bytes)
    if rows_budget >= min(B, sublane):
        # Full-width rows fit the budget.
        tc = C
        tb = _round_rows(min(rows_budget, B), B, sublane)
    else:
        # One row exceeds the budget: tile the lane (column) dimension too.
        tb = B if B <= sublane else sublane
        tc = (_TARGET_BLOCK_BYTES // (tb * itemsize)) // 128 * 128
        tc = min(max(tc, 128), C)
    return tb, tc


# ---------------------------------------------------------------------------
# Wrapper (the nn.Module-equivalent forward).
# ---------------------------------------------------------------------------
def positional_encoding_forward(x, pe_table, *, p=0.1, training=False, seed=0,
                                use_pallas=None):
    """x: (B, S, D). pe_table: (max_len, D). Returns (B, S, D)."""
    B, S, D = x.shape
    pe = pe_table[:S, :]                                   # pe[:, :seq_len]
    C = S * D

    if use_pallas is None:
        # Tiny tensors: fused XLA elementwise is already at roofline; the fixed
        # pallas_call overhead dominates below ~64K elements.
        use_pallas = x.size >= (1 << 16)

    if training and p >= 1.0:
        return jnp.zeros_like(x)

    if not use_pallas:
        # NOTE: this fallback uses jax.random.bernoulli, so its dropout mask is
        # not bit-identical to the in-kernel hash mask for the same seed.
        y = x + pe[None, :, :].astype(x.dtype)
        if training and p > 0.0:
            keep = jax.random.bernoulli(jax.random.PRNGKey(seed), 1.0 - p, y.shape)
            y = jnp.where(keep, y / (1.0 - p), 0.0).astype(x.dtype)
        return y

    # Lane-dense flattened layout: (B, C) with C = S*D as the last (lane) dim.
    x2 = x.reshape(B, C)
    pe2 = pe.reshape(1, C).astype(x.dtype)

    itemsize = x.dtype.itemsize
    tb, tc = _choose_block(B, C, itemsize)
    grid = (pl.cdiv(B, tb), pl.cdiv(C, tc))

    # ~4 MiB blocks -> (2 in + 2 out) buffers + resident pe ~ 16-17 MiB.
    # 40 MiB scoped limit gives headroom and is safe on v5e/v6e (128 MiB) and
    # v7x (64 MiB physical per TC).
    compiler_params = pltpu.CompilerParams(
        dimension_semantics=("parallel", "parallel"),
        vmem_limit_bytes=40 * 1024 * 1024,
    )
    out_shape = jax.ShapeDtypeStruct((B, C), x.dtype)

    if not training or p == 0.0:
        out2 = pl.pallas_call(
            pe_add_kernel,
            out_shape=out_shape,
            grid_spec=pltpu.PrefetchScalarGridSpec(
                num_scalar_prefetch=0,
                grid=grid,
                in_specs=[
                    pl.BlockSpec((tb, tc), lambda i, j: (i, j)),   # x tile
                    pl.BlockSpec((1, tc), lambda i, j: (0, j)),    # pe, column tile
                ],
                out_specs=pl.BlockSpec((tb, tc), lambda i, j: (i, j)),
            ),
            compiler_params=compiler_params,
        )(x2, pe2)
    else:
        # p (hence threshold/scale) is static module config; the seed is dynamic
        # and lands in SMEM via scalar prefetch -> no recompile per training step.
        thr = min(int(round(p * (1 << 32))), (1 << 32) - 1)
        kernel = functools.partial(
            pe_add_dropout_kernel,
            thr=thr,
            scale=1.0 / (1.0 - p),
            n_cols=C,
        )
        s = int(seed) & 0xFFFFFFFF
        if s >= (1 << 31):
            s -= (1 << 32)                                   # store as int32 bit-pattern
        seed_arr = jnp.array([s], dtype=jnp.int32)

        out2 = pl.pallas_call(
            kernel,
            out_shape=out_shape,
            grid_spec=pltpu.PrefetchScalarGridSpec(
                num_scalar_prefetch=1,
                grid=grid,
                in_specs=[
                    pl.BlockSpec((tb, tc), lambda i, j, seed_ref: (i, j)),
                    pl.BlockSpec((1, tc), lambda i, j, seed_ref: (0, j)),
                ],
                out_specs=pl.BlockSpec((tb, tc), lambda i, j, seed_ref: (i, j)),
            ),
            compiler_params=compiler_params,
        )(seed_arr, x2, pe2)

    return out2.reshape(B, S, D)


# ---------------------------------------------------------------------------
if __name__ == "__main__":
    B, S, D = 2, 8, 32          # batch, seq_len, d_model
    MAX_LEN = 64
    P_DROPOUT = 0.1

    key = jax.random.PRNGKey(0)
    x = jax.random.normal(key, (B, S, D), dtype=jnp.float32)
    pe_table = make_pe_table(MAX_LEN, D)

    # Eval-mode forward (deterministic): x + pe[:, :S].  Force the Pallas path
    # so the kernel itself is exercised even at this toy size.
    out_eval = positional_encoding_forward(
        x, pe_table, p=P_DROPOUT, training=False, use_pallas=True)
    out_eval = jax.block_until_ready(out_eval)

    ref = x + pe_table[None, :S, :]
    assert out_eval.shape == (B, S, D)
    assert jnp.allclose(out_eval, ref, atol=1e-6), "eval-mode mismatch"

    # Training-mode forward (in-kernel dropout, seed via SMEM scalar prefetch).
    out_train = positional_encoding_forward(
        x, pe_table, p=P_DROPOUT, training=True, seed=123, use_pallas=True)
    out_train = jax.block_until_ready(out_train)
    assert out_train.shape == (B, S, D)

    # Every element must be either 0 (dropped) or (x+pe)/(1-p) (kept & rescaled).
    scaled = ref / (1.0 - P_DROPOUT)
    ok = jnp.isclose(out_train, scaled, atol=1e-5) | jnp.isclose(out_train, 0.0, atol=1e-7)
    assert bool(jnp.all(ok)), "train-mode dropout values inconsistent"

    # Same seed must reproduce the same mask (seed is a runtime scalar now).
    out_train2 = jax.block_until_ready(positional_encoding_forward(
        x, pe_table, p=P_DROPOUT, training=True, seed=123, use_pallas=True))
    assert bool(jnp.all(out_train == out_train2)), "dropout mask not reproducible"

    print("KERNEL_OK")
</pallas_src>

<mosaic_0001>
module attributes {stable_mosaic.version = 11 : i64} {
  func.func @pe_add_kernel(%arg0: i32, %arg1: i32, %arg2: memref<2x256xf32, #tpu.memory_space<vmem>>, %arg3: memref<1x256xf32, #tpu.memory_space<vmem>>, %arg4: memref<2x256xf32, #tpu.memory_space<vmem>>) attributes {dimension_semantics = [#tpu.dimension_semantics<parallel>, #tpu.dimension_semantics<parallel>], iteration_bounds = array<i64: 1, 1>, scalar_prefetch = 0 : i64, scratch_operands = 0 : i64, tpu.core_type = #tpu.core_type<tc>, window_params = [{transform_indices = @transform_0, window_bounds = array<i64: 2, 256>}, {transform_indices = @transform_1, window_bounds = array<i64: 1, 256>}, {transform_indices = @transform_2, window_bounds = array<i64: 2, 256>}]} {
    %c0 = arith.constant 0 : index
    %c0_0 = arith.constant 0 : index
    %0 = vector.load %arg2[%c0, %c0_0] : memref<2x256xf32, #tpu.memory_space<vmem>>, vector<2x256xf32>
    %c0_1 = arith.constant 0 : index
    %c0_2 = arith.constant 0 : index
    %1 = vector.load %arg3[%c0_1, %c0_2] : memref<1x256xf32, #tpu.memory_space<vmem>>, vector<1x256xf32>
    %2 = vector.broadcast %1 : vector<1x256xf32> to vector<2x256xf32>
    %3 = arith.addf %0, %2 : vector<2x256xf32>
    %c0_3 = arith.constant 0 : index
    %c0_4 = arith.constant 0 : index
    %4 = vector.load %arg4[%c0_3, %c0_4] : memref<2x256xf32, #tpu.memory_space<vmem>>, vector<2x256xf32>
    tpu.vector_store %arg4[%c0_3, %c0_4], %3 {strides = array<i32>} : memref<2x256xf32, #tpu.memory_space<vmem>>, vector<2x256xf32>,
    return
  }
  func.func @transform_0(%arg0: i32, %arg1: i32) -> (i32, i32) {
    %c0_i32 = arith.constant 0 : i32
    return %arg0, %arg1 : i32, i32
  }
  func.func @transform_1(%arg0: i32, %arg1: i32) -> (i32, i32) {
    %c0_i32 = arith.constant 0 : i32
    %c0_i32_0 = arith.constant 0 : i32
    return %c0_i32, %arg1 : i32, i32
  }
  func.func @transform_2(%arg0: i32, %arg1: i32) -> (i32, i32) {
    %c0_i32 = arith.constant 0 : i32
    return %arg0, %arg1 : i32, i32
  }
}

</mosaic_0001>

<llo_original>
// kernel: tpu_custom_call.1
$region0: #{tpu_custom_call.1}
  #allocation0 [shape = 'u32[]', space=smem, size = 0x4, offset = 0x4, fixed_abs, tag = 'smem constant byte address 0x4 - core index']
  #allocation1 [shape = 'u32[144,128]{1,0:T(1,128)}', space=vmem, size = 0x12000, scoped, tag = 'internal scratch']
  %s0 = inlined_call_operand.hbm [shape: f32[2,256], index: 0, kind: input, shape index: {}]
  %s1 = inlined_call_operand.vmem [shape: f32[1,256], index: 1, kind: input, shape index: {}]
  %s2 = inlined_call_operand.hbm [shape: f32[2,256], index: 2, kind: output, shape index: {}]
  %s3 = sld [smem:[#allocation0]]
  $region22: #{tpu_custom_call.1} parent=0
    _
  %s5 = ssub.s32 1, %s3
  %s6 = scalar_select 0, %s5, %s3
  $region1: #{tpu_custom_call.1} parent=0
    #allocation2 [shape = 'u8[2048]{0}', space=vmem, size = 0x800, scoped, tag = 'input window, operand 0, single buffered']
    #allocation3 [shape = 's32[1]{0}', space=sflag, size = 0x4, scoped, tag = 'scoped memory for tpu_custom_call.1']
    #allocation4 [shape = 's32[1]{0}', space=sflag, size = 0x4, scoped, tag = 'scoped memory for tpu_custom_call.1']
    #allocation5 [shape = 'u8[2048]{0}', space=vmem, size = 0x800, scoped, tag = 'output window, operand 0, single buffered']
    %7 = vsyncpa [#allocation3], 0
    %8 = vsyncpa [#allocation4], 0
    // Predicated region
    $region2: #{tpu_custom_call.1} parent=1 // pred_check
      _
    $region3: #{tpu_custom_call.1} parent=1 // pred_check_branch
      %10 = sbr.rel (0) target = $region5
    $region4: #{tpu_custom_call.1} parent=1 // pred_region
      %s12 = ssub.s32 64, 64
      %13 = vsyncadd [#allocation3], %s12
      %s15 = sshll.u32 [#allocation2], 4
      %s16 = int_to_ptr.vmem [resolvable:$true] %s15
      %18 = dma.hbm_to_vmem [thread:$0]  %s0, 64, %s16, [#allocation3]
    $region5: #{tpu_custom_call.1} parent=1 // pred_fallthru
      _
    // Predicated region
    $region6: #{tpu_custom_call.1} parent=1 // pred_check
      _
    $region7: #{tpu_custom_call.1} parent=1 // pred_check_branch
      %20 = sbr.rel (0) target = $region9
    $region8: #{tpu_custom_call.1} parent=1 // pred_region
      _
    $region9: #{tpu_custom_call.1} parent=1 // pred_fallthru
      _
    // Predicated region
    $region10: #{tpu_custom_call.1} parent=1 // pred_check
      _
    $region11: #{tpu_custom_call.1} parent=1 // pred_check_branch
      %22 = sbr.rel (0) target = $region13
    $region12: #{tpu_custom_call.1} parent=1 // pred_region
      %23 = dma.done [#allocation3], 64
    $region13: #{tpu_custom_call.1} parent=1 // pred_fallthru
      _
    %v24 = vld [vmem:[#allocation2] sm:$0xf]
    %v25 = vld [vmem:[%s1] sm:$0x3]
    %v27 = vlaneseq
    %v28 = vshrl.u32 %v27, 7
    %v29 = vsub.s32 0, %v28
    %v30 = vrot.slane %v25, %v29
    %v31 = vlaneseq
    %v32 = vshrl.u32 %v31, 7
    %v33 = vsub.s32 1, %v32
    %v34 = vrot.slane %v25, %v33
    %v35 = vcombine.low %v30, %v34
    %v37 = vunpack.c.l.s4 1983009808
    %v38 = vunpack.c.0.s8 %v37
    %v39 = vlaneseq
    %v40 = vshrl.u32 %v39, 7
    %v41 = vsub.s32 %v38, %v40
    %v42 = vrot.slane %v35, %v41
    %v44 = vadd.f32 %v24, %v42
    %45 = vst [vmem:[#allocation5] sm:$0xf] %v44
    // Predicated region
    $region14: #{tpu_custom_call.1} parent=1 // pred_check
      _
    $region15: #{tpu_custom_call.1} parent=1 // pred_check_branch
      %47 = sbr.rel (0) target = $region17
    $region16: #{tpu_custom_call.1} parent=1 // pred_region
      %s49 = ssub.s32 64, 64
      %50 = vsyncadd [#allocation4], %s49
      %s52 = sshll.u32 [#allocation5], 4
      %s53 = int_to_ptr.vmem [resolvable:$true] %s52
      %55 = dma.vmem_to_hbm [thread:$0]  %s53, 64, %s2, [#allocation4]
    $region17: #{tpu_custom_call.1} parent=1 // pred_fallthru
      _
    // Predicated region
    $region18: #{tpu_custom_call.1} parent=1 // pred_check
      _
    $region19: #{tpu_custom_call.1} parent=1 // pred_check_branch
      %57 = sbr.rel (0) target = $region21
    $region20: #{tpu_custom_call.1} parent=1 // pred_region
      %58 = dma.done [#allocation4], 64
    $region21: #{tpu_custom_call.1} parent=1 // pred_fallthru
      _
    %59 = vsyncpa [#allocation3], 1
    %60 = vsyncpa [#allocation4], 1

</llo_original>
